<compile_context>
chip_gen: v5e
topology: v5e:2x2
jax: 0.10.0
libtpu: 0.0.40
codegen_flags: <defaults>
</compile_context>

<pallas_src>
import functools

import jax
import jax.numpy as jnp
import numpy as np
from jax.experimental import pallas as pl
from jax.experimental.pallas import tpu as pltpu


def _round_up(x, m):
    return ((x + m - 1) // m) * m


def _slab_layout(I, H, O):
    """Row offsets of each parameter inside the single packed slab."""
    rI, rH, rO = _round_up(I, 8), _round_up(H, 8), _round_up(O, 8)
    off = {}
    r = 0
    off["w_in"] = r; r += rI          # (I,) column
    off["b_in"] = r; r += rI          # (I,) column
    off["b1"] = r; r += rH            # (H,) column
    off["b2"] = r; r += rH            # (H,) column
    off["b3"] = r; r += rO            # (O,) column
    off["w1"] = r; r += rH            # (H, I)  torch (out, in)
    off["w2"] = r; r += rH            # (H, H)
    off["w3"] = r; r += rO            # (O, H)
    rows = r
    lanes = _round_up(max(I, H, 1), 128)
    return off, rows, lanes


def pack_params(params):
    """Pack the 9 CTRL_NET parameters into ONE sublane/lane-aligned slab.

    Call once and reuse; the slab stays VMEM-resident across grid steps.
    """
    w1 = jnp.asarray(params["w1"], jnp.float32)     # (H, I)
    w2 = jnp.asarray(params["w2"], jnp.float32)     # (H, H)
    w3 = jnp.asarray(params["w3"], jnp.float32)     # (O, H)
    H, I = w1.shape
    O = w3.shape[0]
    off, rows, lanes = _slab_layout(I, H, O)

    def col(v):
        return jnp.asarray(v, jnp.float32).reshape(-1)

    slab = jnp.zeros((rows, lanes), jnp.float32)
    slab = slab.at[off["w_in"]:off["w_in"] + I, 0].set(col(params["w_in"]))
    slab = slab.at[off["b_in"]:off["b_in"] + I, 0].set(col(params["b_in"]))
    slab = slab.at[off["b1"]:off["b1"] + H, 0].set(col(params["b1"]))
    slab = slab.at[off["b2"]:off["b2"] + H, 0].set(col(params["b2"]))
    slab = slab.at[off["b3"]:off["b3"] + O, 0].set(col(params["b3"]))
    slab = slab.at[off["w1"]:off["w1"] + H, 0:I].set(w1)
    slab = slab.at[off["w2"]:off["w2"] + H, 0:H].set(w2)
    slab = slab.at[off["w3"]:off["w3"] + O, 0:H].set(w3)
    return slab, (I, H, O)


def ctrl_net_kernel(x_ref, p_ref, out_ref, *, I, H, O):
    off, _, _ = _slab_layout(I, H, O)

    # Static, sublane/lane-aligned slices of the resident parameter slab.
    w_in = p_ref[off["w_in"]:off["w_in"] + I, 0:1]   # (I, 1) per-sublane column
    b_in = p_ref[off["b_in"]:off["b_in"] + I, 0:1]   # (I, 1)
    b1 = p_ref[off["b1"]:off["b1"] + H, 0:1]         # (H, 1)
    b2 = p_ref[off["b2"]:off["b2"] + H, 0:1]         # (H, 1)
    b3 = p_ref[off["b3"]:off["b3"] + O, 0:1]         # (O, 1)
    w1 = p_ref[off["w1"]:off["w1"] + H, 0:I]         # (H, I)
    w2 = p_ref[off["w2"]:off["w2"] + H, 0:H]         # (H, H)
    w3 = p_ref[off["w3"]:off["w3"] + O, 0:H]         # (O, H)

    # Feature-major: batch on the lane dim. In-kernel transpose rides the XLU.
    xt = x_ref[...].T                                               # (I, tb)

    # Depthwise 1x1 Conv1d (groups=I) == per-feature scale + bias, then ReLU.
    h = jnp.maximum(xt * w_in + b_in, 0.0)                          # (I, tb)
    h = jnp.maximum(
        jnp.dot(w1, h, preferred_element_type=jnp.float32) + b1, 0.0)   # (H, tb)
    h = jnp.maximum(
        jnp.dot(w2, h, preferred_element_type=jnp.float32) + b2, 0.0)   # (H, tb)
    out_ref[...] = (
        jnp.dot(w3, h, preferred_element_type=jnp.float32) + b3)        # (O, tb)


def _choose_tiles(B, block_b):
    """Pick (batch_tile, padded_batch). Large tiles; grid>=2 for big B (v7x)."""
    block_b = max(128, _round_up(block_b, 128))
    n_steps = -(-B // block_b)
    if B >= 2048:
        # Guarantee >=2 grid steps so the "parallel" axis can use both v7x TCs.
        # Tiles stay >=1024 rows, so per-step overhead remains amortized
        # (and this is harmless on single-TC v5e/v6e).
        n_steps = max(n_steps, 2)
    if n_steps <= 1:
        tb = max(8, _round_up(B, 8))       # single step: pad only to 8 sublanes
        return tb, tb
    tb = _round_up(-(-B // n_steps), 128)  # multi-step: lane-dense output tiles
    return tb, n_steps * tb


def ctrl_net_forward(x, slab, dims, *, block_b=4096):
    """x: (B, I) float32. slab/dims from pack_params (packed once, cached)."""
    I, H, O = dims
    B, I_in = x.shape
    assert I_in == I

    tb, b_pad = _choose_tiles(B, block_b)
    if b_pad != B:
        # TODO(synk): for huge B with B % tb != 0, handle the ragged tail with a
        # second single-step call instead of padding (avoids a full-array copy).
        x = jnp.pad(x, ((0, b_pad - B), (0, 0)))
    grid = b_pad // tb

    kernel = functools.partial(ctrl_net_kernel, I=I, H=H, O=O)

    flops = 2 * b_pad * (I * H + H * H + H * O) + 4 * b_pad * (I + 2 * H + O)
    bytes_accessed = 4 * (b_pad * I + int(slab.size) + b_pad * O)

    out_t = pl.pallas_call(
        kernel,
        out_shape=jax.ShapeDtypeStruct((O, b_pad), jnp.float32),
        grid_spec=pltpu.PrefetchScalarGridSpec(
            num_scalar_prefetch=0,
            grid=(grid,),
            in_specs=[
                # x: tiled over batch rows, full feature width.
                pl.BlockSpec((tb, I), lambda i: (i, 0)),
                # Parameter slab: constant block index -> stays VMEM-resident.
                pl.BlockSpec(slab.shape, lambda i: (0, 0)),
            ],
            # Feature-major output: O rows, lane-dense batch tiles.
            out_specs=pl.BlockSpec((O, tb), lambda i: (0, i)),
        ),
        compiler_params=pltpu.CompilerParams(
            dimension_semantics=("parallel",)),
        cost_estimate=pl.CostEstimate(
            flops=flops, transcendentals=0, bytes_accessed=bytes_accessed),
    )(x, slab)

    # Kernel stores (O, B_pad) for lane-dense writes; callers that can consume
    # the feature-major layout directly may skip this tiny transpose.
    return out_t[:, :B].T


def init_params(key, I, O):
    """Deterministic synthetic parameters matching CTRL_NET((I, O)) shapes."""
    H = int(np.rint(np.sqrt(I + O)))
    ks = jax.random.split(key, 8)
    # Conv1d(I, I, 1, groups=I): weight (I, 1, 1) -> (I,), bias (I,)
    w_in = jax.random.normal(ks[0], (I,), jnp.float32) * 0.5
    b_in = jax.random.normal(ks[1], (I,), jnp.float32) * 0.1
    # Linear layers kept in torch's native (out, in) orientation.
    w1 = jax.random.normal(ks[2], (H, I), jnp.float32) / np.sqrt(I)
    b1 = jax.random.normal(ks[3], (H,), jnp.float32) * 0.1
    w2 = jax.random.normal(ks[4], (H, H), jnp.float32) / np.sqrt(H)
    b2 = jax.random.normal(ks[5], (H,), jnp.float32) * 0.1
    w3 = jax.random.normal(ks[6], (O, H), jnp.float32) / np.sqrt(H)
    b3 = jax.random.normal(ks[7], (O,), jnp.float32) * 0.1
    return dict(w_in=w_in, b_in=b_in, w1=w1, b1=b1, w2=w2, b2=b2,
                w3=w3, b3=b3), H


def reference_forward(x, p):
    """NumPy float64 reference (torch-orientation weights)."""
    f = lambda a: np.asarray(a, np.float64)
    h = np.maximum(f(x) * f(p["w_in"]) + f(p["b_in"]), 0.0)
    h = np.maximum(h @ f(p["w1"]).T + f(p["b1"]), 0.0)
    h = np.maximum(h @ f(p["w2"]).T + f(p["b2"]), 0.0)
    return h @ f(p["w3"]).T + f(p["b3"])


if __name__ == "__main__":
    # CTRL_NET(IO=(16, 9)) -> H = round(sqrt(25)) = 5
    B, I, O = 8, 16, 9
    key = jax.random.PRNGKey(0)
    kx, kp, kx2 = jax.random.split(key, 3)

    params, H = init_params(kp, I, O)
    slab, dims = pack_params(params)   # packed once, reused across calls

    # Primary small-shape check (single grid step, tb=8).
    x = jax.random.normal(kx, (B, I), jnp.float32)
    out = jax.block_until_ready(ctrl_net_forward(x, slab, dims))
    ref = reference_forward(np.asarray(x), params)
    assert out.shape == (B, O)
    np.testing.assert_allclose(np.asarray(out), ref, rtol=2e-2, atol=2e-2)

    # Secondary check: multiple grid steps (tb=128) + ragged-batch padding path.
    B2 = 300
    x2 = jax.random.normal(kx2, (B2, I), jnp.float32)
    out2 = jax.block_until_ready(ctrl_net_forward(x2, slab, dims, block_b=128))
    ref2 = reference_forward(np.asarray(x2), params)
    assert out2.shape == (B2, O)
    np.testing.assert_allclose(np.asarray(out2), ref2, rtol=2e-2, atol=2e-2)

    print("KERNEL_OK")
</pallas_src>

<mosaic_0001>
module attributes {stable_mosaic.version = 11 : i64} {
  func.func @ctrl_net_kernel(%arg0: i32, %arg1: memref<8x16xf32, #tpu.memory_space<vmem>>, %arg2: memref<96x128xf32, #tpu.memory_space<vmem>>, %arg3: memref<9x8xf32, #tpu.memory_space<vmem>>) attributes {dimension_semantics = [#tpu.dimension_semantics<parallel>], iteration_bounds = array<i64: 1>, scalar_prefetch = 0 : i64, scratch_operands = 0 : i64, tpu.core_type = #tpu.core_type<tc>, window_params = [{transform_indices = @transform_0, window_bounds = array<i64: 8, 16>}, {pipeline_mode = #tpu.pipeline_mode<synchronous>, transform_indices = @transform_1, window_bounds = array<i64: 96, 128>}, {transform_indices = @transform_2, window_bounds = array<i64: 9, 8>}]} {
    %c0 = arith.constant 0 : index
    %c0_0 = arith.constant 0 : index
    %0 = vector.load %arg2[%c0, %c0_0] : memref<96x128xf32, #tpu.memory_space<vmem>>, vector<16x1xf32>
    %c16 = arith.constant 16 : index
    %c0_1 = arith.constant 0 : index
    %1 = vector.load %arg2[%c16, %c0_1] : memref<96x128xf32, #tpu.memory_space<vmem>>, vector<16x1xf32>
    %c32 = arith.constant 32 : index
    %c0_2 = arith.constant 0 : index
    %2 = vector.load %arg2[%c32, %c0_2] : memref<96x128xf32, #tpu.memory_space<vmem>>, vector<5x1xf32>
    %c40 = arith.constant 40 : index
    %c0_3 = arith.constant 0 : index
    %3 = vector.load %arg2[%c40, %c0_3] : memref<96x128xf32, #tpu.memory_space<vmem>>, vector<5x1xf32>
    %c48 = arith.constant 48 : index
    %c0_4 = arith.constant 0 : index
    %4 = vector.load %arg2[%c48, %c0_4] : memref<96x128xf32, #tpu.memory_space<vmem>>, vector<9x1xf32>
    %c64 = arith.constant 64 : index
    %c0_5 = arith.constant 0 : index
    %5 = vector.load %arg2[%c64, %c0_5] : memref<96x128xf32, #tpu.memory_space<vmem>>, vector<5x16xf32>
    %c72 = arith.constant 72 : index
    %c0_6 = arith.constant 0 : index
    %6 = vector.load %arg2[%c72, %c0_6] : memref<96x128xf32, #tpu.memory_space<vmem>>, vector<5x5xf32>
    %c80 = arith.constant 80 : index
    %c0_7 = arith.constant 0 : index
    %7 = vector.load %arg2[%c80, %c0_7] : memref<96x128xf32, #tpu.memory_space<vmem>>, vector<9x5xf32>
    %c0_8 = arith.constant 0 : index
    %c0_9 = arith.constant 0 : index
    %8 = vector.load %arg1[%c0_8, %c0_9] : memref<8x16xf32, #tpu.memory_space<vmem>>, vector<8x16xf32>
    %9 = tpu.transpose %8, [1, 0] : vector<8x16xf32> -> vector<16x8xf32>
    %10 = vector.broadcast %0 : vector<16x1xf32> to vector<16x8xf32>
    %11 = arith.mulf %9, %10 : vector<16x8xf32>
    %12 = vector.broadcast %1 : vector<16x1xf32> to vector<16x8xf32>
    %13 = arith.addf %11, %12 : vector<16x8xf32>
    %cst = arith.constant 0.000000e+00 : f32
    %14 = vector.broadcast %cst : f32 to vector<16x8xf32>
    %15 = arith.maximumf %13, %14 : vector<16x8xf32>
    %cst_10 = arith.constant dense<0.000000e+00> : vector<5x8xf32>
    %16 = tpu.matmul %5, %15, %cst_10 {dimension_numbers = #tpu.dot_dimension_numbers<[1], [0], [0], [1], [0, 0, 1, 1], [], []>} : vector<5x16xf32>, vector<16x8xf32>, vector<5x8xf32> -> vector<5x8xf32>
    %17 = vector.broadcast %2 : vector<5x1xf32> to vector<5x8xf32>
    %18 = arith.addf %16, %17 : vector<5x8xf32>
    %cst_11 = arith.constant 0.000000e+00 : f32
    %19 = vector.broadcast %cst_11 : f32 to vector<5x8xf32>
    %20 = arith.maximumf %18, %19 : vector<5x8xf32>
    %cst_12 = arith.constant dense<0.000000e+00> : vector<5x8xf32>
    %21 = tpu.matmul %6, %20, %cst_12 {dimension_numbers = #tpu.dot_dimension_numbers<[1], [0], [0], [1], [0, 0, 1, 1], [], []>} : vector<5x5xf32>, vector<5x8xf32>, vector<5x8xf32> -> vector<5x8xf32>
    %22 = vector.broadcast %3 : vector<5x1xf32> to vector<5x8xf32>
    %23 = arith.addf %21, %22 : vector<5x8xf32>
    %cst_13 = arith.constant 0.000000e+00 : f32
    %24 = vector.broadcast %cst_13 : f32 to vector<5x8xf32>
    %25 = arith.maximumf %23, %24 : vector<5x8xf32>
    %cst_14 = arith.constant dense<0.000000e+00> : vector<9x8xf32>
    %26 = tpu.matmul %7, %25, %cst_14 {dimension_numbers = #tpu.dot_dimension_numbers<[1], [0], [0], [1], [0, 0, 1, 1], [], []>} : vector<9x5xf32>, vector<5x8xf32>, vector<9x8xf32> -> vector<9x8xf32>
    %27 = vector.broadcast %4 : vector<9x1xf32> to vector<9x8xf32>
    %28 = arith.addf %26, %27 : vector<9x8xf32>
    %c0_15 = arith.constant 0 : index
    %c0_16 = arith.constant 0 : index
    %29 = vector.load %arg3[%c0_15, %c0_16] : memref<9x8xf32, #tpu.memory_space<vmem>>, vector<9x8xf32>
    tpu.vector_store %arg3[%c0_15, %c0_16], %28 {strides = array<i32>} : memref<9x8xf32, #tpu.memory_space<vmem>>, vector<9x8xf32>,
    return
  }
  func.func @transform_0(%arg0: i32) -> (i32, i32) {
    %c0_i32 = arith.constant 0 : i32
    %c0_i32_0 = arith.constant 0 : i32
    return %arg0, %c0_i32 : i32, i32
  }
  func.func @transform_1(%arg0: i32) -> (i32, i32) {
    %c0_i32 = arith.constant 0 : i32
    %c0_i32_0 = arith.constant 0 : i32
    %c0_i32_1 = arith.constant 0 : i32
    return %c0_i32, %c0_i32_0 : i32, i32
  }
  func.func @transform_2(%arg0: i32) -> (i32, i32) {
    %c0_i32 = arith.constant 0 : i32
    %c0_i32_0 = arith.constant 0 : i32
    return %c0_i32, %arg0 : i32, i32
  }
}

</mosaic_0001>

<llo_original>
// kernel: tpu_custom_call.1
$region0: #{tpu_custom_call.1}
  #allocation0 [shape = 'u32[]', space=smem, size = 0x4, offset = 0x4, fixed_abs, tag = 'smem constant byte address 0x4 - core index']
  #allocation1 [shape = 'u32[72,128]{1,0:T(1,128)}', space=vmem, size = 0x9000, scoped, tag = 'internal scratch']
  %s0 = inlined_call_operand.hbm [shape: f32[8,16], index: 0, kind: input, shape index: {}]
  %s1 = inlined_call_operand.hbm [shape: f32[96,128], index: 1, kind: input, shape index: {}]
  %s2 = inlined_call_operand.vmem [shape: f32[9,8], index: 2, kind: output, shape index: {}]
  %s3 = sld [smem:[#allocation0]]
  $region26: #{tpu_custom_call.1} parent=0
    _
  %s5 = ssub.s32 1, %s3
  %s6 = scalar_select 0, %s5, %s3
  $region1: #{tpu_custom_call.1} parent=0
    #allocation2 [shape = 'u8[4096]{0}', space=vmem, size = 0x1000, scoped, tag = 'input window, operand 0, single buffered']
    #allocation3 [shape = 's32[1]{0}', space=sflag, size = 0x4, scoped, tag = 'scoped memory for tpu_custom_call.1']
    #allocation4 [shape = 'u8[49152]{0}', space=vmem, size = 0xc000, scoped, tag = 'input window, operand 1, single buffered']
    #allocation5 [shape = 's32[1]{0}', space=sflag, size = 0x4, scoped, tag = 'scoped memory for tpu_custom_call.1']
    %7 = vsyncpa [#allocation3], 0
    %8 = vsyncpa [#allocation5], 0
    // Predicated region
    $region2: #{tpu_custom_call.1} parent=1 // pred_check
      _
    $region3: #{tpu_custom_call.1} parent=1 // pred_check_branch
      %10 = sbr.rel (0) target = $region5
    $region4: #{tpu_custom_call.1} parent=1 // pred_region
      %12 = vsyncadd [#allocation3], 0
      %s14 = sshll.u32 %s0, 4
      %s15 = int_to_ptr.hbm [resolvable:$true] %s14
      %s16 = sshll.u32 [#allocation2], 4
      %s17 = int_to_ptr.vmem [resolvable:$true] %s16
      %19 = dma.hbm_to_vmem [thread:$0]  %s15, 128, %s17, [#allocation3]
    $region5: #{tpu_custom_call.1} parent=1 // pred_fallthru
      _
    // Predicated region
    $region6: #{tpu_custom_call.1} parent=1 // pred_check
      _
    $region7: #{tpu_custom_call.1} parent=1 // pred_check_branch
      %21 = sbr.rel (0) target = $region9
    $region8: #{tpu_custom_call.1} parent=1 // pred_region
      %23 = vsyncadd [#allocation5], 0
      %s24 = sshll.u32 %s1, 4
      %s25 = int_to_ptr.hbm [resolvable:$true] %s24
      %s26 = sshll.u32 [#allocation4], 4
      %s27 = int_to_ptr.vmem [resolvable:$true] %s26
      %32 = dma.hbm_to_vmem [thread:$0]  %s25, 1536, %s27, [#allocation5], 128, 128, 8
    $region9: #{tpu_custom_call.1} parent=1 // pred_fallthru
      _
    // Predicated region
    $region10: #{tpu_custom_call.1} parent=1 // pred_check
      _
    $region11: #{tpu_custom_call.1} parent=1 // pred_check_branch
      %34 = sbr.rel (0) target = $region13
    $region12: #{tpu_custom_call.1} parent=1 // pred_region
      %36 = dma.done [#allocation3], 128
    $region13: #{tpu_custom_call.1} parent=1 // pred_fallthru
      _
    // Predicated region
    $region14: #{tpu_custom_call.1} parent=1 // pred_check
      _
    $region15: #{tpu_custom_call.1} parent=1 // pred_check_branch
      %38 = sbr.rel (0) target = $region17
    $region16: #{tpu_custom_call.1} parent=1 // pred_region
      %40 = dma.done [#allocation5], 1536
    $region17: #{tpu_custom_call.1} parent=1 // pred_fallthru
      _
    %v41 = vld [vmem:[#allocation4] sm:$0xff]
    %v42 = vld [vmem:[#allocation4 + $0x8] sm:$0xff]
    %v43 = vld [vmem:[#allocation4 + $0x10] sm:$0xff]
    %v44 = vld [vmem:[#allocation4 + $0x18] sm:$0xff]
    %v45 = vld [vmem:[#allocation4 + $0x20] sm:$0x1f]
    %v46 = vld [vmem:[#allocation4 + $0x28] sm:$0x1f]
    %v47 = vld [vmem:[#allocation4 + $0x30] sm:$0xff]
    %v48 = vld [vmem:[#allocation4 + $0x38] sm:$0x1]
    %v49 = vld [vmem:[#allocation4 + $0x40] sm:$0x1f]
    %v50 = vld [vmem:[#allocation4 + $0x48] sm:$0x1f]
    %v51 = vld [vmem:[#allocation4 + $0x50] sm:$0xff]
    %v52 = vld [vmem:[#allocation4 + $0x58] sm:$0x1]
    %v53 = vld [vmem:[#allocation2] sm:$0xff]
    %54 = vxpose.xlu0.b32.start [1/16] %v53, 128
    %55 = vxpose.xlu0.b32.cont [2/16] 0.0, 128
    %56 = vxpose.xlu0.b32.cont [3/16] 0.0, 128
    %57 = vxpose.xlu0.b32.cont [4/16] 0.0, 128
    %58 = vxpose.xlu0.b32.cont [5/16] 0.0, 128
    %59 = vxpose.xlu0.b32.cont [6/16] 0.0, 128
    %60 = vxpose.xlu0.b32.cont [7/16] 0.0, 128
    %61 = vxpose.xlu0.b32.cont [8/16] 0.0, 128
    %62 = vxpose.xlu0.b32.cont [9/16] 0.0, 128
    %63 = vxpose.xlu0.b32.cont [10/16] 0.0, 128
    %64 = vxpose.xlu0.b32.cont [11/16] 0.0, 128
    %65 = vxpose.xlu0.b32.cont [12/16] 0.0, 128
    %66 = vxpose.xlu0.b32.cont [13/16] 0.0, 128
    %67 = vxpose.xlu0.b32.cont [14/16] 0.0, 128
    %68 = vxpose.xlu0.b32.cont [15/16] 0.0, 128
    %69 = vxpose.xlu0.b32.end [16/16] 0.0, 128
    %v70 = vpop.trf.xlu0
    %v71 = vpop.trf.xlu0
    %v72 = vpop.trf.xlu0
    %v73 = vpop.trf.xlu0
    %v74 = vpop.trf.xlu0
    %v75 = vpop.trf.xlu0
    %v76 = vpop.trf.xlu0
    %v77 = vpop.trf.xlu0
    %v78 = vpop.trf.xlu0
    %v79 = vpop.trf.xlu0
    %v80 = vpop.trf.xlu0
    %v81 = vpop.trf.xlu0
    %v82 = vpop.trf.xlu0
    %v83 = vpop.trf.xlu0
    %v84 = vpop.trf.xlu0
    %v85 = vpop.trf.xlu0
    %87 = vset.pattern.permute.xlu0 0
    %88 = vperm.xlu0 %87, %v41
    %v89 = vpop.permute.xlu0 %88
    %92 = vset.pattern.permute.xlu0 0
    %93 = vperm.xlu0 %92, %v42
    %v94 = vpop.permute.xlu0 %93
    %v96 = vmul.f32 %v70, %v89
    %v97 = vmul.f32 %v71, %v94
    %99 = vset.pattern.permute.xlu0 0
    %100 = vperm.xlu0 %99, %v43
    %v101 = vpop.permute.xlu0 %100
    %104 = vset.pattern.permute.xlu0 0
    %105 = vperm.xlu0 %104, %v44
    %v106 = vpop.permute.xlu0 %105
    %v108 = vadd.f32 %v96, %v101
    %v109 = vadd.f32 %v97, %v106
    %v110 = vmax.f32 %v108, 0.0
    %v111 = vmax.f32 %v109, 0.0
    %113 = vset.pattern.permute.xlu0 0
    %114 = vperm.xlu0 %113, %v45
    %v115 = vpop.permute.xlu0 %114
    %vm117 = vcmask 130048
    %v119 = vsel %vm117, %v49, 0
    %121 = vmatpush.msra.mxu0 0.0
    %122 = vmatpush.msra.mxu0 0.0
    %123 = vmatpush.msra.mxu0 0.0
    %124 = vmatpush.msra.mxu0 0.0
    %125 = vmatpush.msra.mxu0 0.0
    %126 = vmatpush.msra.mxu0 0.0
    %127 = vmatpush.msra.mxu0 0.0
    %128 = vmatpush.msra.mxu0 0.0
    %129 = vmatpush.msra.mxu0 0.0
    %130 = vmatpush.msra.mxu0 0.0
    %131 = vmatpush.msra.mxu0 0.0
    %132 = vmatpush.msra.mxu0 0.0
    %133 = vmatpush.msra.mxu0 0.0
    %134 = vmatpush.msra.mxu0 0.0
    %135 = vmatpush.msra.mxu0 %v111
    %136 = vmatpush.msra.mxu0 %v110
    %137 = vmatmul.f32.gmra.mxu0 %v119
    %v138 = vpop.f32.mrf.mxu0
    %v139 = vadd.f32 %v115, %v138
    %140 = vdwg.mxu0
    %v141 = vmax.f32 %v139, 0.0
    %143 = vset.pattern.permute.xlu0 0
    %144 = vperm.xlu0 %143, %v46
    %v145 = vpop.permute.xlu0 %144
    %vm147 = vcmask 39936
    %v149 = vsel %vm147, %v50, 0
    %vm151 = vcmask 1044480
    %v153 = vsel %vm151, %v141, 0
    %155 = vmatpush.msra.mxu0 0.0
    %156 = vmatpush.msra.mxu0 0.0
    %157 = vmatpush.msra.mxu0 0.0
    %158 = vmatpush.msra.mxu0 0.0
    %159 = vmatpush.msra.mxu0 0.0
    %160 = vmatpush.msra.mxu0 0.0
    %161 = vmatpush.msra.mxu0 0.0
    %162 = vmatpush.msra.mxu0 0.0
    %163 = vmatpush.msra.mxu0 0.0
    %164 = vmatpush.msra.mxu0 0.0
    %165 = vmatpush.msra.mxu0 0.0
    %166 = vmatpush.msra.mxu0 0.0
    %167 = vmatpush.msra.mxu0 0.0
    %168 = vmatpush.msra.mxu0 0.0
    %169 = vmatpush.msra.mxu0 0.0
    %170 = vmatpush.msra.mxu0 %v153
    %171 = vmatmul.f32.gmra.mxu0 %v149
    %v172 = vpop.f32.mrf.mxu0
    %v173 = vadd.f32 %v145, %v172
    %174 = vdwg.mxu0
    %v175 = vmax.f32 %v173, 0.0
    %177 = vset.pattern.permute.xlu0 0
    %178 = vperm.xlu0 %177, %v47
    %v179 = vpop.permute.xlu0 %178
    %182 = vset.pattern.permute.xlu0 0
    %183 = vperm.xlu0 %182, %v48
    %v184 = vpop.permute.xlu0 %183
    %v187 = vsel %vm147, %v51, 0
    %v190 = vsel %vm147, %v52, 0
    %v193 = vsel %vm151, %v175, 0
    %195 = vmatpush.msra.mxu0 0.0
    %196 = vmatpush.msra.mxu0 0.0
    %197 = vmatpush.msra.mxu0 0.0
    %198 = vmatpush.msra.mxu0 0.0
    %199 = vmatpush.msra.mxu0 0.0
    %200 = vmatpush.msra.mxu0 0.0
    %201 = vmatpush.msra.mxu0 0.0
    %202 = vmatpush.msra.mxu0 0.0
    %203 = vmatpush.msra.mxu0 0.0
    %204 = vmatpush.msra.mxu0 0.0
    %205 = vmatpush.msra.mxu0 0.0
    %206 = vmatpush.msra.mxu0 0.0
    %207 = vmatpush.msra.mxu0 0.0
    %208 = vmatpush.msra.mxu0 0.0
    %209 = vmatpush.msra.mxu0 0.0
    %210 = vmatpush.msra.mxu0 %v193
    %211 = vmatmul.f32.gmra.mxu0 %v187
    %v212 = vpop.f32.mrf.mxu0
    %v213 = vadd.f32 %v179, %v212
    %214 = vmatmul.f32.gmra.mxu0 %v190
    %v215 = vpop.f32.mrf.mxu0
    %v216 = vadd.f32 %v184, %v215
    %217 = vdwg.mxu0
    %vm218 = vcmask 64512
    %219 = vst.msk [vmem:[%s2] sm:$0xff] %vm218, %v213
    %vm220 = vcmask 57344
    %221 = vst.msk [vmem:[%s2 + $0x8] sm:$0x1] %vm220, %v216
    // Predicated region
    $region18: #{tpu_custom_call.1} parent=1 // pred_check
      _
    $region19: #{tpu_custom_call.1} parent=1 // pred_check_branch
      %223 = sbr.rel (0) target = $region21
    $region20: #{tpu_custom_call.1} parent=1 // pred_region
      _
    $region21: #{tpu_custom_call.1} parent=1 // pred_fallthru
      _
    // Predicated region
    $region22: #{tpu_custom_call.1} parent=1 // pred_check
      _
    $region23: #{tpu_custom_call.1} parent=1 // pred_check_branch
      %225 = sbr.rel (0) target = $region25
    $region24: #{tpu_custom_call.1} parent=1 // pred_region
      _
    $region25: #{tpu_custom_call.1} parent=1 // pred_fallthru
      _
    %226 = vsyncpa [#allocation3], 1
    %227 = vsyncpa [#allocation5], 1

</llo_original>
